<compile_context>
chip_gen: v5e
topology: v5e:2x2
jax: 0.10.0
libtpu: 0.0.40
codegen_flags: <defaults>
</compile_context>

<pallas_src>
import jax
import jax.numpy as jnp
from jax import lax
from jax.experimental import pallas as pl
from jax.experimental.pallas import tpu as pltpu

LANES = 128
MAX_BLOCK_BYTES = 2 * 1024 * 1024   # per-input, per-buffer block target (2 MiB)


def _cdiv(a, b):
    return (a + b - 1) // b


def _round_up(x, m):
    return _cdiv(x, m) * m


def _sublane_multiple(dtype):
    # Packed-tile constraint along the second-to-last dim: 8 for 32-bit dtypes,
    # 16 for bf16/f16, 32 for 8-bit dtypes.
    bits = jnp.dtype(dtype).itemsize * 8
    return max(8, (32 // bits) * 8)


def _num_tensorcores():
    """Best-effort: TensorCores one Pallas grid can span on this device.

    v4 / v5p (megacore) and v7x expose 2 TensorCores per device and Mosaic can
    shard a "parallel" grid axis across them; v5e / v6e are single-core.  Any
    detection failure falls back to 1 (a serial segment loop is always correct).
    """
    try:
        kind = jax.devices()[0].device_kind.lower()
    except Exception:
        return 1
    if "lite" in kind or "v5e" in kind or "v6e" in kind:
        return 1
    if any(tag in kind for tag in ("v7", "7x", "v4", "v5p")):
        return 2
    return 1


def _make_kernels(rows, row_tile, tiles_per_seg, needs_row_mask):
    """Build the two pass kernels, closing over the static tiling params."""
    sub_blocks = row_tile // 8

    def masked_abs_diff(pred_ref, target_ref):
        # |target - pred| with invalid (target <= 0) elements forced to 0.
        # When a block can overhang the real rows (ragged last tile, or the
        # clamped duplicate tile of an uneven segment split) a row-range mask
        # kills the garbage / duplicated rows as well; it is skipped statically
        # on the common aligned case.
        tgt = target_ref[...].astype(jnp.float32)
        prd = pred_ref[...].astype(jnp.float32)
        valid = tgt > 0.0
        if needs_row_mask:
            tile_idx = pl.program_id(0) * tiles_per_seg + pl.program_id(1)
            row0 = tile_idx * row_tile
            row_ids = row0 + lax.broadcasted_iota(jnp.int32, (row_tile, LANES), 0)
            valid = jnp.logical_and(valid, row_ids < rows)
        return jnp.where(valid, jnp.abs(tgt - prd), 0.0)

    def absmax_kernel(pred_ref, target_ref, out_ref, acc_ref):
        t = pl.program_id(1)

        @pl.when(t == 0)
        def _():
            acc_ref[...] = jnp.zeros_like(acc_ref)

        diff = masked_abs_diff(pred_ref, target_ref)
        # Fold the (row_tile, 128) tile to one (8, 128) vreg: pure VPU
        # (elementwise max across sublane-blocks), 4 KiB scratch.
        acc_ref[...] = jnp.maximum(
            acc_ref[...], diff.reshape(sub_blocks, 8, LANES).max(axis=0))

        @pl.when(t == tiles_per_seg - 1)
        def _():  # lane-dense (1, 8, 128) per-segment partial output
            out_ref[...] = acc_ref[...].reshape(1, 8, LANES)

    def berhu_sum_kernel(params_ref, pred_ref, target_ref, out_ref, acc_ref):
        t = pl.program_id(1)

        @pl.when(t == 0)
        def _():
            acc_ref[...] = jnp.zeros_like(acc_ref)

        diff = masked_abs_diff(pred_ref, target_ref)
        delta = params_ref[0]          # SMEM scalar
        inv_2delta = params_ref[1]     # precomputed 0.5 / delta (0 if delta == 0)
        # Strict inequalities match F.threshold; invalid elements have diff == 0
        # and contribute 0 on both branches.
        lin = jnp.where(diff < delta, diff, 0.0)
        quad = jnp.where(diff > delta, diff * diff * inv_2delta, 0.0)
        acc_ref[...] += (lin + quad).reshape(sub_blocks, 8, LANES).sum(axis=0)

        @pl.when(t == tiles_per_seg - 1)
        def _():
            out_ref[...] = acc_ref[...].reshape(1, 8, LANES)

    return absmax_kernel, berhu_sum_kernel


def berhu_loss(pred, target, threshold=0.2,
               max_block_bytes=MAX_BLOCK_BYTES, segments=None):
    """BerHu loss matching util/criterion.py BerHuLoss.forward.

    Note: when no element has target > 0 (delta == 0) this returns 0.0, whereas
    the PyTorch reference raises on the empty max.
    """
    assert pred.ndim == target.ndim, "inconsistent dimensions"
    assert pred.shape == target.shape, "inconsistent shapes"

    n = int(pred.size)
    itemsize = max(jnp.dtype(pred.dtype).itemsize, jnp.dtype(target.dtype).itemsize)
    sub_mult = max(_sublane_multiple(pred.dtype), _sublane_multiple(target.dtype))

    pred_f = pred.reshape(-1)      # free reshape (bitcast), original dtype
    target_f = target.reshape(-1)

    n_lane = _round_up(n, LANES)
    if n_lane != n:
        # TODO(synk): rare ragged case (numel % 128 != 0) still pays one pad
        # copy of both inputs; a true zero-copy path needs a 1-D manual-DMA
        # view and is not worth the lowering risk for this rare shape class.
        pred_f = jnp.pad(pred_f, (0, n_lane - n))
        target_f = jnp.pad(target_f, (0, n_lane - n))

    rows = n_lane // LANES
    pred2 = pred_f.reshape(rows, LANES)
    target2 = target_f.reshape(rows, LANES)

    # ~2 MiB of HBM bytes per input per grid step (4096 rows f32, 8192 bf16);
    # 2 inputs x 2 pipeline buffers stays within the default scoped VMEM limit
    # on every generation (v5e 16 MiB, v6e/v7x 32 MiB).
    row_cap = max(sub_mult,
                  (max_block_bytes // (LANES * itemsize)) // sub_mult * sub_mult)
    row_tile = min(row_cap, _round_up(rows, sub_mult))
    tiles_total = _cdiv(rows, row_tile)

    nseg = segments if segments is not None else _num_tensorcores()
    nseg = max(1, min(nseg, tiles_total))
    tiles_per_seg = _cdiv(tiles_total, nseg)
    last_tile = tiles_total - 1
    grid = (nseg, tiles_per_seg)
    # Mask rows only when a block can overhang real data (ragged last tile) or
    # when an uneven segment split produces a clamped duplicate tile.
    needs_row_mask = (rows % row_tile != 0) or (nseg * tiles_per_seg != tiles_total)

    def data_map(c, t):
        # Clamp so the (rare) trailing step of the last segment never indexes a
        # fully out-of-range block; its rows are masked out in-kernel.
        return (jnp.minimum(c * tiles_per_seg + t, last_tile), 0)

    absmax_kernel, berhu_sum_kernel = _make_kernels(
        rows, row_tile, tiles_per_seg, needs_row_mask)

    data_spec = pl.BlockSpec((row_tile, LANES), data_map)
    smem_spec = pl.BlockSpec(memory_space=pltpu.MemorySpace.SMEM)
    out_spec = pl.BlockSpec((1, 8, LANES), lambda c, t: (c, 0, 0))
    out_shape = jax.ShapeDtypeStruct((nseg, 8, LANES), jnp.float32)
    scratch = [pltpu.VMEM((8, LANES), jnp.float32)]
    # TODO(synk): on v7x, verify the leading "parallel" axis actually shards
    # across both TensorCores (else switch it to pltpu.CORE_PARALLEL).
    cparams = pltpu.CompilerParams(dimension_semantics=("parallel", "arbitrary"))

    bytes_in = n * (jnp.dtype(pred.dtype).itemsize + jnp.dtype(target.dtype).itemsize)
    bytes_out = nseg * 8 * LANES * 4
    cost1 = pl.CostEstimate(flops=5 * n, transcendentals=0,
                            bytes_accessed=bytes_in + bytes_out)
    cost2 = pl.CostEstimate(flops=9 * n, transcendentals=0,
                            bytes_accessed=bytes_in + bytes_out + 8)

    # Pass 1: max(|target - pred|) over valid elements (per-segment partials).
    seg_max = pl.pallas_call(
        absmax_kernel,
        out_shape=out_shape,
        grid_spec=pltpu.PrefetchScalarGridSpec(
            num_scalar_prefetch=0,
            grid=grid,
            in_specs=[data_spec, data_spec],
            out_specs=out_spec,
            scratch_shapes=scratch,
        ),
        compiler_params=cparams,
        cost_estimate=cost1,
    )(pred2, target2)

    # Each segment block holds per-(sublane, lane) partial maxima (>= 0), so a
    # plain max over the tiny (nseg, 8, 128) output is the global masked max.
    delta = (threshold * jnp.max(seg_max)).astype(jnp.float32)
    inv_2delta = jnp.where(delta > 0, 0.5 / delta, 0.0).astype(jnp.float32)
    params = jnp.stack([delta, inv_2delta])   # (2,) f32, lives in SMEM in pass 2

    # Pass 2: piecewise BerHu sum given delta.
    seg_sum = pl.pallas_call(
        berhu_sum_kernel,
        out_shape=out_shape,
        grid_spec=pltpu.PrefetchScalarGridSpec(
            num_scalar_prefetch=0,
            grid=grid,
            in_specs=[smem_spec, data_spec, data_spec],
            out_specs=out_spec,
            scratch_shapes=scratch,
        ),
        compiler_params=cparams,
        cost_estimate=cost2,
    )(params, pred2, target2)

    # Per-position partial sums; total is the sum of the tiny output.
    return jnp.sum(seg_sum)


def _berhu_reference(pred, target, threshold=0.2):
    # Pure-JAX transcription of the PyTorch forward (for the self-check).
    pred = pred.astype(jnp.float32)
    target = target.astype(jnp.float32)
    mask = target > 0
    diff = jnp.where(mask, jnp.abs(target - pred), 0.0)
    delta = threshold * jnp.max(diff)
    part1 = jnp.where(diff < delta, diff, 0.0)
    part2 = jnp.where(diff > delta, diff * diff / (2.0 * delta), 0.0)
    return jnp.sum(jnp.where(mask, part1 + part2, 0.0))


if __name__ == "__main__":
    key = jax.random.PRNGKey(0)
    k1, k2, k3, k4 = jax.random.split(key, 4)

    # Primary check: NCHW input, batch=2, channels=4, spatial 16x16 (f32).
    shape = (2, 4, 16, 16)
    pred = jax.random.normal(k1, shape, dtype=jnp.float32)
    target = jax.random.normal(k2, shape, dtype=jnp.float32)  # ~half > 0
    loss = berhu_loss(pred, target)
    jax.block_until_ready(loss)
    ref = _berhu_reference(pred, target)
    assert jnp.allclose(loss, ref, rtol=1e-4, atol=1e-5), (loss, ref)

    # Secondary check: ragged rows + forced 2-segment grid with a tiny block,
    # exercising the clamped duplicate tile and the row mask.
    shape2 = (2, 4, 17, 16)
    pred_b = jax.random.normal(k3, shape2, dtype=jnp.float32)
    target_b = jax.random.normal(k4, shape2, dtype=jnp.float32)
    loss_b = berhu_loss(pred_b, target_b,
                        max_block_bytes=8 * LANES * 4, segments=2)
    jax.block_until_ready(loss_b)
    ref_b = _berhu_reference(pred_b, target_b)
    assert jnp.allclose(loss_b, ref_b, rtol=1e-4, atol=1e-5), (loss_b, ref_b)

    # Third check: bf16 inputs exercise the dtype-dependent sublane tiling and
    # the in-register upcast path.
    pred_c = pred.astype(jnp.bfloat16)
    target_c = target.astype(jnp.bfloat16)
    loss_c = berhu_loss(pred_c, target_c)
    jax.block_until_ready(loss_c)
    ref_c = _berhu_reference(pred_c, target_c)
    assert jnp.allclose(loss_c, ref_c, rtol=1e-4, atol=1e-5), (loss_c, ref_c)

    print("KERNEL_OK")
</pallas_src>

<mosaic_0001>
module attributes {stable_mosaic.version = 11 : i64} {
  func.func @absmax_kernel(%arg0: i32, %arg1: i32, %arg2: memref<16x128xf32, #tpu.memory_space<vmem>>, %arg3: memref<16x128xf32, #tpu.memory_space<vmem>>, %arg4: memref<1x8x128xf32, #tpu.memory_space<vmem>>, %arg5: memref<8x128xf32, #tpu.memory_space<vmem>>) attributes {dimension_semantics = [#tpu.dimension_semantics<parallel>, #tpu.dimension_semantics<arbitrary>], iteration_bounds = array<i64: 1, 1>, scalar_prefetch = 0 : i64, scratch_operands = 1 : i64, tpu.core_type = #tpu.core_type<tc>, window_params = [{transform_indices = @transform_0, window_bounds = array<i64: 16, 128>}, {transform_indices = @transform_1, window_bounds = array<i64: 16, 128>}, {transform_indices = @transform_2, window_bounds = array<i64: 1, 8, 128>}]} {
    %c0_i32 = arith.constant 0 : i32
    %0 = arith.cmpi eq, %arg1, %c0_i32 : i32
    %1 = arith.extui %0 : i1 to i32
    %c0_i32_0 = arith.constant 0 : i32
    %2 = arith.cmpi ne, %1, %c0_i32_0 : i32
    scf.if %2 {
      %cst_12 = arith.constant 0.000000e+00 : f32
      %19 = vector.broadcast %cst_12 : f32 to vector<8x128xf32>
      %c0_13 = arith.constant 0 : index
      %c0_14 = arith.constant 0 : index
      %20 = vector.load %arg5[%c0_13, %c0_14] : memref<8x128xf32, #tpu.memory_space<vmem>>, vector<8x128xf32>
      tpu.vector_store %arg5[%c0_13, %c0_14], %19 {strides = array<i32>} : memref<8x128xf32, #tpu.memory_space<vmem>>, vector<8x128xf32>,
    } else {
    }
    %c0 = arith.constant 0 : index
    %c0_1 = arith.constant 0 : index
    %3 = vector.load %arg3[%c0, %c0_1] : memref<16x128xf32, #tpu.memory_space<vmem>>, vector<16x128xf32>
    %c0_2 = arith.constant 0 : index
    %c0_3 = arith.constant 0 : index
    %4 = vector.load %arg2[%c0_2, %c0_3] : memref<16x128xf32, #tpu.memory_space<vmem>>, vector<16x128xf32>
    %cst = arith.constant 0.000000e+00 : f32
    %5 = vector.broadcast %cst : f32 to vector<16x128xf32>
    %6 = arith.cmpf ogt, %3, %5 : vector<16x128xf32>
    %7 = arith.subf %3, %4 : vector<16x128xf32>
    %8 = math.absf %7 : vector<16x128xf32>
    %cst_4 = arith.constant 0.000000e+00 : f32
    %9 = vector.broadcast %cst_4 : f32 to vector<16x128xf32>
    %10 = arith.select %6, %8, %9 : vector<16x128xi1>, vector<16x128xf32>
    %c0_5 = arith.constant 0 : index
    %c0_6 = arith.constant 0 : index
    %11 = vector.load %arg5[%c0_5, %c0_6] : memref<8x128xf32, #tpu.memory_space<vmem>>, vector<8x128xf32>
    %12 = vector.shape_cast %10 : vector<16x128xf32> to vector<2x8x128xf32>
    %cst_7 = arith.constant dense<0xFF800000> : vector<8x128xf32>
    %13 = vector.multi_reduction <maximumf>, %12, %cst_7 [0] : vector<2x8x128xf32> to vector<8x128xf32>
    %14 = arith.maximumf %11, %13 : vector<8x128xf32>
    %c0_8 = arith.constant 0 : index
    %c0_9 = arith.constant 0 : index
    %15 = vector.load %arg5[%c0_8, %c0_9] : memref<8x128xf32, #tpu.memory_space<vmem>>, vector<8x128xf32>
    tpu.vector_store %arg5[%c0_8, %c0_9], %14 {strides = array<i32>} : memref<8x128xf32, #tpu.memory_space<vmem>>, vector<8x128xf32>,
    %c0_i32_10 = arith.constant 0 : i32
    %16 = arith.cmpi eq, %arg1, %c0_i32_10 : i32
    %17 = arith.extui %16 : i1 to i32
    %c0_i32_11 = arith.constant 0 : i32
    %18 = arith.cmpi ne, %17, %c0_i32_11 : i32
    scf.if %18 {
      %c0_12 = arith.constant 0 : index
      %c0_13 = arith.constant 0 : index
      %19 = vector.load %arg5[%c0_12, %c0_13] : memref<8x128xf32, #tpu.memory_space<vmem>>, vector<8x128xf32>
      %20 = vector.shape_cast %19 : vector<8x128xf32> to vector<1x8x128xf32>
      %c0_14 = arith.constant 0 : index
      %c0_15 = arith.constant 0 : index
      %c0_16 = arith.constant 0 : index
      %21 = vector.load %arg4[%c0_14, %c0_15, %c0_16] : memref<1x8x128xf32, #tpu.memory_space<vmem>>, vector<1x8x128xf32>
      tpu.vector_store %arg4[%c0_14, %c0_15, %c0_16], %20 {strides = array<i32>} : memref<1x8x128xf32, #tpu.memory_space<vmem>>, vector<1x8x128xf32>,
    } else {
    }
    return
  }
  func.func @transform_0(%arg0: i32, %arg1: i32) -> (i32, i32) {
    %c1_i32 = arith.constant 1 : i32
    %0 = arith.muli %arg0, %c1_i32 : i32
    %1 = arith.addi %0, %arg1 : i32
    %c0_i32 = arith.constant 0 : i32
    %2 = arith.minsi %1, %c0_i32 : i32
    %c0_i32_0 = arith.constant 0 : i32
    %c0_i32_1 = arith.constant 0 : i32
    return %2, %c0_i32_0 : i32, i32
  }
  func.func @transform_1(%arg0: i32, %arg1: i32) -> (i32, i32) {
    %c1_i32 = arith.constant 1 : i32
    %0 = arith.muli %arg0, %c1_i32 : i32
    %1 = arith.addi %0, %arg1 : i32
    %c0_i32 = arith.constant 0 : i32
    %2 = arith.minsi %1, %c0_i32 : i32
    %c0_i32_0 = arith.constant 0 : i32
    %c0_i32_1 = arith.constant 0 : i32
    return %2, %c0_i32_0 : i32, i32
  }
  func.func @transform_2(%arg0: i32, %arg1: i32) -> (i32, i32, i32) {
    %c0_i32 = arith.constant 0 : i32
    %c0_i32_0 = arith.constant 0 : i32
    %c0_i32_1 = arith.constant 0 : i32
    return %arg0, %c0_i32, %c0_i32_0 : i32, i32, i32
  }
}

</mosaic_0001>

<llo_original>
// kernel: tpu_custom_call.1
$region0: #{tpu_custom_call.1}
  #allocation0 [shape = 'u32[]', space=smem, size = 0x4, offset = 0x4, fixed_abs, tag = 'smem constant byte address 0x4 - core index']
  #allocation1 [shape = 'u32[72,128]{1,0:T(1,128)}', space=vmem, size = 0x9000, scoped, tag = 'internal scratch']
  #allocation2 [shape = 'f32[8,128]{1,0:T(8,128)}', space=vmem, size = 0x1000, scoped, tag = 'scratch operand']
  %s0 = inlined_call_operand.hbm [shape: f32[16,128], index: 0, kind: input, shape index: {}]
  %s1 = inlined_call_operand.hbm [shape: f32[16,128], index: 1, kind: input, shape index: {}]
  %s2 = inlined_call_operand.hbm [shape: f32[1,8,128], index: 2, kind: output, shape index: {}]
  %s3 = sld [smem:[#allocation0]]
  $region34: #{tpu_custom_call.1} parent=0
    _
  %s5 = ssub.s32 1, %s3
  %s6 = scalar_select 0, %s5, %s3
  $region1: #{tpu_custom_call.1} parent=0
    #allocation3 [shape = 'u8[8192]{0}', space=vmem, size = 0x2000, scoped, tag = 'input window, operand 0, single buffered']
    #allocation4 [shape = 's32[1]{0}', space=sflag, size = 0x4, scoped, tag = 'scoped memory for tpu_custom_call.1']
    #allocation5 [shape = 's32[1]{0}', space=sflag, size = 0x4, scoped, tag = 'scoped memory for tpu_custom_call.1']
    #allocation6 [shape = 'u8[8192]{0}', space=vmem, size = 0x2000, scoped, tag = 'input window, operand 1, single buffered']
    #allocation7 [shape = 's32[1]{0}', space=sflag, size = 0x4, scoped, tag = 'scoped memory for tpu_custom_call.1']
    #allocation8 [shape = 'u8[4096]{0}', space=vmem, size = 0x1000, scoped, tag = 'output window, operand 0, single buffered']
    %7 = vsyncpa [#allocation4], 0
    %8 = vsyncpa [#allocation7], 0
    %9 = vsyncpa [#allocation5], 0
    // Predicated region
    $region2: #{tpu_custom_call.1} parent=1 // pred_check
      _
    $region3: #{tpu_custom_call.1} parent=1 // pred_check_branch
      %11 = sbr.rel (0) target = $region5
    $region4: #{tpu_custom_call.1} parent=1 // pred_region
      %s12 = sadd.s32 0, 0
      %p13 = scmp.lt.s32.totalorder %s12, 0
      %s14 = scalar_select %p13, %s12, 0
      %s15 = smul.u32 2, %s14
      %17 = vsyncadd [#allocation4], 0
      %s18 = smul.addr %s15, 8
      %s19 = scalar_lea.hbm %s0, %s18
      %s20 = sshll.u32 %s19, 4
      %s21 = int_to_ptr.hbm [resolvable:$true] %s20
      %s22 = sshll.u32 [#allocation3], 4
      %s23 = int_to_ptr.vmem [resolvable:$true] %s22
      %28 = dma.hbm_to_vmem [thread:$0]  %s21, 256, %s23, [#allocation4], 128, 128, 8
    $region5: #{tpu_custom_call.1} parent=1 // pred_fallthru
      _
    // Predicated region
    $region6: #{tpu_custom_call.1} parent=1 // pred_check
      _
    $region7: #{tpu_custom_call.1} parent=1 // pred_check_branch
      %30 = sbr.rel (0) target = $region9
    $region8: #{tpu_custom_call.1} parent=1 // pred_region
      %s31 = sadd.s32 0, 0
      %p32 = scmp.lt.s32.totalorder %s31, 0
      %s33 = scalar_select %p32, %s31, 0
      %s34 = smul.u32 2, %s33
      %36 = vsyncadd [#allocation7], 0
      %s37 = smul.addr %s34, 8
      %s38 = scalar_lea.hbm %s1, %s37
      %s39 = sshll.u32 %s38, 4
      %s40 = int_to_ptr.hbm [resolvable:$true] %s39
      %s41 = sshll.u32 [#allocation6], 4
      %s42 = int_to_ptr.vmem [resolvable:$true] %s41
      %47 = dma.hbm_to_vmem [thread:$0]  %s40, 256, %s42, [#allocation7], 128, 128, 8
    $region9: #{tpu_custom_call.1} parent=1 // pred_fallthru
      _
    // Predicated region
    $region10: #{tpu_custom_call.1} parent=1 // pred_check
      _
    $region11: #{tpu_custom_call.1} parent=1 // pred_check_branch
      %49 = sbr.rel (0) target = $region13
    $region12: #{tpu_custom_call.1} parent=1 // pred_region
      %51 = dma.done [#allocation4], 256
    $region13: #{tpu_custom_call.1} parent=1 // pred_fallthru
      _
    // Predicated region
    $region14: #{tpu_custom_call.1} parent=1 // pred_check
      _
    $region15: #{tpu_custom_call.1} parent=1 // pred_check_branch
      %53 = sbr.rel (0) target = $region17
    $region16: #{tpu_custom_call.1} parent=1 // pred_region
      %55 = dma.done [#allocation7], 256
    $region17: #{tpu_custom_call.1} parent=1 // pred_fallthru
      _
    %s56 = sadd.s32 0, 0
    %p57 = scmp.lt.s32.totalorder %s56, 0
    %s58 = scalar_select %p57, %s56, 0
    %s59 = smul.u32 2, %s58
    %s60 = sadd.s32 0, 0
    %p61 = scmp.lt.s32.totalorder %s60, 0
    %s62 = scalar_select %p61, %s60, 0
    %s63 = smul.u32 2, %s62
    %p64 = scmp.eq.s32.totalorder 0, 0
    // Predicated region
    $region18: #{tpu_custom_call.1} parent=1 // pred_check
      %p65 = pneg %p64
    $region19: #{tpu_custom_call.1} parent=1 // pred_check_branch
      %67 = sbr.rel (%p65) target = $region21
    $region20: #{tpu_custom_call.1} parent=1 // pred_region
      %68 = vst [vmem:[#allocation2] sm:$0xff] 0.0
    $region21: #{tpu_custom_call.1} parent=1 // pred_fallthru
      _
    %v69 = vld [vmem:[#allocation6] sm:$0xff]
    %v70 = vld [vmem:[#allocation6 + $0x8] sm:$0xff]
    %v71 = vld [vmem:[#allocation3] sm:$0xff]
    %v72 = vld [vmem:[#allocation3 + $0x8] sm:$0xff]
    %vm73 = vcmp.gt.f32.partialorder %v69, 0.0
    %vm74 = vcmp.gt.f32.partialorder %v70, 0.0
    %v75 = vsub.f32 %v69, %v71
    %v76 = vsub.f32 %v70, %v72
    %v77 = vand.u32 2147483647, %v75
    %v78 = vand.u32 2147483647, %v76
    %v79 = vsel %vm73, %v77, 0.0
    %v80 = vsel %vm74, %v78, 0.0
    %v81 = vld [vmem:[#allocation2] sm:$0xff]
    %v82 = vmax.f32 %v79, %v80
    %v83 = vmax.f32 %v81, %v82
    %84 = vst [vmem:[#allocation2] sm:$0xff] %v83
    // Predicated region
    $region22: #{tpu_custom_call.1} parent=1 // pred_check
      %p85 = pneg %p64
    $region23: #{tpu_custom_call.1} parent=1 // pred_check_branch
      %87 = sbr.rel (%p85) target = $region25
    $region24: #{tpu_custom_call.1} parent=1 // pred_region
      %v88 = vld [vmem:[#allocation2] sm:$0xff]
      %89 = vst [vmem:[#allocation8] sm:$0xff] %v88
    $region25: #{tpu_custom_call.1} parent=1 // pred_fallthru
      _
    // Predicated region
    $region26: #{tpu_custom_call.1} parent=1 // pred_check
      _
    $region27: #{tpu_custom_call.1} parent=1 // pred_check_branch
      %91 = sbr.rel (0) target = $region29
    $region28: #{tpu_custom_call.1} parent=1 // pred_region
      %93 = vsyncadd [#allocation5], 0
      %s95 = sshll.u32 [#allocation8], 4
      %s96 = int_to_ptr.vmem [resolvable:$true] %s95
      %s97 = sshll.u32 %s2, 4
      %s98 = int_to_ptr.hbm [resolvable:$true] %s97
      %100 = dma.vmem_to_hbm [thread:$0]  %s96, 128, %s98, [#allocation5]
    $region29: #{tpu_custom_call.1} parent=1 // pred_fallthru
      _
    // Predicated region
    $region30: #{tpu_custom_call.1} parent=1 // pred_check
      _
    $region31: #{tpu_custom_call.1} parent=1 // pred_check_branch
      %102 = sbr.rel (0) target = $region33
    $region32: #{tpu_custom_call.1} parent=1 // pred_region
      %104 = dma.done [#allocation5], 128
    $region33: #{tpu_custom_call.1} parent=1 // pred_fallthru
      _
    %105 = vsyncpa [#allocation4], 1
    %106 = vsyncpa [#allocation7], 1
    %107 = vsyncpa [#allocation5], 1

</llo_original>
